<compile_context>
chip_gen: v7x
topology: tpu7x:2x2x1
jax: 0.10.0
libtpu: 0.0.40
codegen_flags: <defaults>
</compile_context>

<pallas_src>
import jax
import jax.numpy as jnp
from jax.experimental import pallas as pl
from jax.experimental.pallas import tpu as pltpu

HIDDEN = 200
LEAKY_SLOPE = 0.01   # PyTorch nn.LeakyReLU default negative_slope
LANE = 128
OUT_COLS = 128       # internal MXU width for the last matmul (only col 0 is real)


def _round_up(n, m):
    return ((n + m - 1) // m) * m


def _predictor_kernel(x_ref, w1_ref, b1_ref, w2_ref, b2_ref, w3_ref, b3_ref,
                      o_ref):
    # In-kernel f32 -> bf16 cast of the activation tile (VPU filler).
    x = x_ref[...].astype(jnp.bfloat16)

    # Linear(input_size, 200) + LeakyReLU   (Dropout = identity in eval mode)
    h1 = jnp.dot(x, w1_ref[...], preferred_element_type=jnp.float32)
    h1 = h1 + b1_ref[...]
    h1 = jnp.where(h1 > 0, h1, LEAKY_SLOPE * h1)

    # Linear(200, 200) + LeakyReLU          (Dropout = identity in eval mode)
    h2 = jnp.dot(h1.astype(jnp.bfloat16), w2_ref[...],
                 preferred_element_type=jnp.float32)
    h2 = h2 + b2_ref[...]
    h2 = jnp.where(h2 > 0, h2, LEAKY_SLOPE * h2)

    # Linear(200, 1): MXU matmul against a zero-padded (H_P, 128) weight,
    # then keep only the single real output column for bias + sigmoid.
    z128 = jnp.dot(h2.astype(jnp.bfloat16), w3_ref[...],
                   preferred_element_type=jnp.float32)
    z = z128[:, :1] + b3_ref[...]                       # (TB, 1) f32
    z = jnp.clip(z, -30.0, 30.0)                        # sigmoid saturated anyway
    o_ref[...] = (1.0 / (1.0 + jnp.exp(-z))).astype(o_ref.dtype)


def prepare_params(params):
    """One-time parameter prep: pad hidden dim 200 -> 256, cast weights to bf16.

    Zero padding keeps the math exact: padded hidden columns carry zero
    weights and zero biases, so the extra lanes stay zero through LeakyReLU,
    and padded w3 rows/columns contribute nothing to the real output column.
    """
    w1, b1, w2, b2, w3, b3 = params
    h_pad = _round_up(HIDDEN, LANE) - HIDDEN            # 200 -> 256

    w1p = jnp.pad(w1, ((0, 0), (0, h_pad))).astype(jnp.bfloat16)        # (IN, 256)
    b1p = jnp.pad(b1, ((0, 0), (0, h_pad))).astype(jnp.float32)         # (1, 256)
    w2p = jnp.pad(w2, ((0, h_pad), (0, h_pad))).astype(jnp.bfloat16)    # (256, 256)
    b2p = jnp.pad(b2, ((0, 0), (0, h_pad))).astype(jnp.float32)         # (1, 256)
    w3p = jnp.pad(w3, ((0, h_pad), (0, OUT_COLS - 1))).astype(jnp.bfloat16)  # (256, 128)
    b3p = b3.astype(jnp.float32)                                        # (1, 1)
    return (w1p, b1p, w2p, b2p, w3p, b3p)


def predictor_forward(x, prepared_params, *, batch_tile=2048):
    """x: (B, input_size) float32 -> (B, 1) float32 (eval-mode Predictor).

    `prepared_params` must come from `prepare_params(...)`.
    """
    w1p, b1p, w2p, b2p, w3p, b3p = prepared_params
    B, IN = x.shape
    H_P = w2p.shape[0]

    # Batch tile: multiple of 8; big enough to amortize per-grid-step overhead
    # (~0.35 us), capped so the working set stays a few MiB (safe under v5e's
    # 16 MiB scoped-VMEM default) and so there are >= 2 grid steps when the
    # batch allows it (v7x has 2 TensorCores sharing the "parallel" axis).
    B8 = _round_up(B, 8)
    TB = min(batch_tile, B8)
    half = _round_up((B + 1) // 2, 8)
    if B8 >= 16 and TB > half:
        TB = half
    Bp = _round_up(B, TB)

    # Only the ragged batch tail is padded (no feature-dim pad / cast pass).
    if Bp != B:
        x = jnp.pad(x, ((0, Bp - B), (0, 0)))

    grid = (Bp // TB,)

    out = pl.pallas_call(
        _predictor_kernel,
        out_shape=jax.ShapeDtypeStruct((Bp, 1), jnp.float32),
        grid=grid,
        in_specs=[
            # Activations: blocked along the batch grid axis; last dim is the
            # full (unpadded) feature width — legal since it equals the array
            # dim even when not a multiple of 128.
            pl.BlockSpec((TB, IN), lambda i: (i, 0)),
            # Weights / biases: constant index maps -> VMEM-resident.
            pl.BlockSpec((IN, H_P), lambda i: (0, 0)),
            pl.BlockSpec((1, H_P), lambda i: (0, 0)),
            pl.BlockSpec((H_P, H_P), lambda i: (0, 0)),
            pl.BlockSpec((1, H_P), lambda i: (0, 0)),
            pl.BlockSpec((H_P, OUT_COLS), lambda i: (0, 0)),
            pl.BlockSpec((1, 1), lambda i: (0, 0)),
        ],
        # Lane width 1 == full output array dim: only (TB, 1) f32 per tile is
        # written back to HBM (vs. (TB, 128) before).
        out_specs=pl.BlockSpec((TB, 1), lambda i: (i, 0)),
        compiler_params=pltpu.CompilerParams(
            dimension_semantics=("parallel",)),
    )(x, w1p, b1p, w2p, b2p, w3p, b3p)

    return out if Bp == B else out[:B]


def init_params(input_size, key):
    """Deterministic synthetic parameters (PyTorch-like uniform fan-in init).

    Weights are stored as (in_features, out_features) == transpose of
    nn.Linear.weight; biases are (1, out_features).
    """
    ks = jax.random.split(key, 6)

    def lin(kw, kb, fan_in, fan_out):
        bound = 1.0 / jnp.sqrt(jnp.float32(fan_in))
        w = jax.random.uniform(kw, (fan_in, fan_out), jnp.float32,
                               -bound, bound)
        b = jax.random.uniform(kb, (1, fan_out), jnp.float32, -bound, bound)
        return w, b

    w1, b1 = lin(ks[0], ks[1], input_size, HIDDEN)
    w2, b2 = lin(ks[2], ks[3], HIDDEN, HIDDEN)
    w3, b3 = lin(ks[4], ks[5], HIDDEN, 1)
    return (w1, b1, w2, b2, w3, b3)


def reference_forward(x, params):
    """Pure-JAX f32 reference (eval-mode Predictor)."""
    w1, b1, w2, b2, w3, b3 = params
    h1 = x @ w1 + b1
    h1 = jnp.where(h1 > 0, h1, LEAKY_SLOPE * h1)
    h2 = h1 @ w2 + b2
    h2 = jnp.where(h2 > 0, h2, LEAKY_SLOPE * h2)
    out = h2 @ w3 + b3
    return jax.nn.sigmoid(out)


if __name__ == "__main__":
    key = jax.random.PRNGKey(0)
    k_x, k_p = jax.random.split(key)

    input_size = 32
    batch = 8

    x = jax.random.normal(k_x, (batch, input_size), jnp.float32)
    params = init_params(input_size, k_p)
    prepared = prepare_params(params)   # one-time weight pad/cast, reusable

    out = predictor_forward(x, prepared)
    out = jax.block_until_ready(out)

    ref = reference_forward(x, params)
    assert out.shape == (batch, 1), out.shape
    # bf16 MXU operands -> loosened tolerance vs the f32 reference.
    max_err = jnp.max(jnp.abs(out - ref))
    assert jnp.allclose(out, ref, atol=2e-2, rtol=2e-2), (
        f"max abs err {max_err}")

    print("KERNEL_OK")
</pallas_src>

<mosaic_0001>
module attributes {stable_mosaic.version = 11 : i64} {
  func.func @_predictor_kernel(%arg0: i32, %arg1: memref<8x32xf32, #tpu.memory_space<vmem>>, %arg2: memref<32x256xbf16, #tpu.memory_space<vmem>>, %arg3: memref<1x256xf32, #tpu.memory_space<vmem>>, %arg4: memref<256x256xbf16, #tpu.memory_space<vmem>>, %arg5: memref<1x256xf32, #tpu.memory_space<vmem>>, %arg6: memref<256x128xbf16, #tpu.memory_space<vmem>>, %arg7: memref<1x1xf32, #tpu.memory_space<vmem>>, %arg8: memref<8x1xf32, #tpu.memory_space<vmem>>) attributes {dimension_semantics = [#tpu.dimension_semantics<parallel>], iteration_bounds = array<i64: 1>, scalar_prefetch = 0 : i64, scratch_operands = 0 : i64, tpu.core_type = #tpu.core_type<tc>, window_params = [{transform_indices = @transform_0, window_bounds = array<i64: 8, 32>}, {pipeline_mode = #tpu.pipeline_mode<synchronous>, transform_indices = @transform_1, window_bounds = array<i64: 32, 256>}, {pipeline_mode = #tpu.pipeline_mode<synchronous>, transform_indices = @transform_2, window_bounds = array<i64: 1, 256>}, {pipeline_mode = #tpu.pipeline_mode<synchronous>, transform_indices = @transform_3, window_bounds = array<i64: 256, 256>}, {pipeline_mode = #tpu.pipeline_mode<synchronous>, transform_indices = @transform_4, window_bounds = array<i64: 1, 256>}, {pipeline_mode = #tpu.pipeline_mode<synchronous>, transform_indices = @transform_5, window_bounds = array<i64: 256, 128>}, {pipeline_mode = #tpu.pipeline_mode<synchronous>, transform_indices = @transform_6, window_bounds = array<i64: 1, 1>}, {transform_indices = @transform_7, window_bounds = array<i64: 8, 1>}]} {
    %c0 = arith.constant 0 : index
    %c0_0 = arith.constant 0 : index
    %0 = vector.load %arg1[%c0, %c0_0] : memref<8x32xf32, #tpu.memory_space<vmem>>, vector<8x32xf32>
    %1 = arith.truncf %0 : vector<8x32xf32> to vector<8x32xbf16>
    %c0_1 = arith.constant 0 : index
    %c0_2 = arith.constant 0 : index
    %2 = vector.load %arg2[%c0_1, %c0_2] : memref<32x256xbf16, #tpu.memory_space<vmem>>, vector<32x256xbf16>
    %cst = arith.constant dense<0.000000e+00> : vector<8x256xf32>
    %3 = tpu.matmul %1, %2, %cst {dimension_numbers = #tpu.dot_dimension_numbers<[1], [0], [0], [1], [0, 0, 1, 1], [], []>} : vector<8x32xbf16>, vector<32x256xbf16>, vector<8x256xf32> -> vector<8x256xf32>
    %c0_3 = arith.constant 0 : index
    %c0_4 = arith.constant 0 : index
    %4 = vector.load %arg3[%c0_3, %c0_4] : memref<1x256xf32, #tpu.memory_space<vmem>>, vector<1x256xf32>
    %5 = vector.broadcast %4 : vector<1x256xf32> to vector<8x256xf32>
    %6 = arith.addf %3, %5 : vector<8x256xf32>
    %cst_5 = arith.constant 0.000000e+00 : f32
    %7 = vector.broadcast %cst_5 : f32 to vector<8x256xf32>
    %8 = arith.cmpf ogt, %6, %7 : vector<8x256xf32>
    %cst_6 = arith.constant 0.00999999977 : f32
    %9 = vector.broadcast %cst_6 : f32 to vector<8x256xf32>
    %10 = arith.mulf %9, %6 : vector<8x256xf32>
    %11 = arith.select %8, %6, %10 : vector<8x256xi1>, vector<8x256xf32>
    %12 = arith.truncf %11 : vector<8x256xf32> to vector<8x256xbf16>
    %c0_7 = arith.constant 0 : index
    %c0_8 = arith.constant 0 : index
    %13 = vector.load %arg4[%c0_7, %c0_8] : memref<256x256xbf16, #tpu.memory_space<vmem>>, vector<256x256xbf16>
    %cst_9 = arith.constant dense<0.000000e+00> : vector<8x256xf32>
    %14 = tpu.matmul %12, %13, %cst_9 {dimension_numbers = #tpu.dot_dimension_numbers<[1], [0], [0], [1], [0, 0, 1, 1], [], []>} : vector<8x256xbf16>, vector<256x256xbf16>, vector<8x256xf32> -> vector<8x256xf32>
    %c0_10 = arith.constant 0 : index
    %c0_11 = arith.constant 0 : index
    %15 = vector.load %arg5[%c0_10, %c0_11] : memref<1x256xf32, #tpu.memory_space<vmem>>, vector<1x256xf32>
    %16 = vector.broadcast %15 : vector<1x256xf32> to vector<8x256xf32>
    %17 = arith.addf %14, %16 : vector<8x256xf32>
    %cst_12 = arith.constant 0.000000e+00 : f32
    %18 = vector.broadcast %cst_12 : f32 to vector<8x256xf32>
    %19 = arith.cmpf ogt, %17, %18 : vector<8x256xf32>
    %cst_13 = arith.constant 0.00999999977 : f32
    %20 = vector.broadcast %cst_13 : f32 to vector<8x256xf32>
    %21 = arith.mulf %20, %17 : vector<8x256xf32>
    %22 = arith.select %19, %17, %21 : vector<8x256xi1>, vector<8x256xf32>
    %23 = arith.truncf %22 : vector<8x256xf32> to vector<8x256xbf16>
    %c0_14 = arith.constant 0 : index
    %c0_15 = arith.constant 0 : index
    %24 = vector.load %arg6[%c0_14, %c0_15] : memref<256x128xbf16, #tpu.memory_space<vmem>>, vector<256x128xbf16>
    %cst_16 = arith.constant dense<0.000000e+00> : vector<8x128xf32>
    %25 = tpu.matmul %23, %24, %cst_16 {dimension_numbers = #tpu.dot_dimension_numbers<[1], [0], [0], [1], [0, 0, 1, 1], [], []>} : vector<8x256xbf16>, vector<256x128xbf16>, vector<8x128xf32> -> vector<8x128xf32>
    %26 = vector.extract_strided_slice %25 {offsets = [0, 0], sizes = [8, 1], strides = [1, 1]} : vector<8x128xf32> to vector<8x1xf32>
    %c0_17 = arith.constant 0 : index
    %c0_18 = arith.constant 0 : index
    %27 = vector.load %arg7[%c0_17, %c0_18] : memref<1x1xf32, #tpu.memory_space<vmem>>, vector<1x1xf32>
    %28 = vector.broadcast %27 : vector<1x1xf32> to vector<8x1xf32>
    %29 = arith.addf %26, %28 : vector<8x1xf32>
    %cst_19 = arith.constant -3.000000e+01 : f32
    %cst_20 = arith.constant 3.000000e+01 : f32
    %30 = vector.broadcast %cst_19 : f32 to vector<8x1xf32>
    %31 = arith.maximumf %30, %29 : vector<8x1xf32>
    %32 = vector.broadcast %cst_20 : f32 to vector<8x1xf32>
    %33 = arith.minimumf %32, %31 : vector<8x1xf32>
    %cst_21 = arith.constant 0.000000e+00 : f32
    %34 = vector.broadcast %cst_21 : f32 to vector<8x1xf32>
    %35 = arith.subf %34, %33 : vector<8x1xf32>
    %36 = math.exp %35 : vector<8x1xf32>
    %cst_22 = arith.constant 1.000000e+00 : f32
    %37 = vector.broadcast %cst_22 : f32 to vector<8x1xf32>
    %38 = arith.addf %37, %36 : vector<8x1xf32>
    %cst_23 = arith.constant 1.000000e+00 : f32
    %39 = vector.broadcast %cst_23 : f32 to vector<8x1xf32>
    %40 = arith.divf %39, %38 : vector<8x1xf32>
    %c0_24 = arith.constant 0 : index
    %c0_25 = arith.constant 0 : index
    %41 = vector.load %arg8[%c0_24, %c0_25] : memref<8x1xf32, #tpu.memory_space<vmem>>, vector<8x1xf32>
    tpu.vector_store %arg8[%c0_24, %c0_25], %40 {strides = array<i32>} : memref<8x1xf32, #tpu.memory_space<vmem>>, vector<8x1xf32>,
    return
  }
  func.func @transform_0(%arg0: i32) -> (i32, i32) {
    %c0_i32 = arith.constant 0 : i32
    %c0_i32_0 = arith.constant 0 : i32
    return %arg0, %c0_i32 : i32, i32
  }
  func.func @transform_1(%arg0: i32) -> (i32, i32) {
    %c0_i32 = arith.constant 0 : i32
    %c0_i32_0 = arith.constant 0 : i32
    %c0_i32_1 = arith.constant 0 : i32
    return %c0_i32, %c0_i32_0 : i32, i32
  }
  func.func @transform_2(%arg0: i32) -> (i32, i32) {
    %c0_i32 = arith.constant 0 : i32
    %c0_i32_0 = arith.constant 0 : i32
    %c0_i32_1 = arith.constant 0 : i32
    return %c0_i32, %c0_i32_0 : i32, i32
  }
  func.func @transform_3(%arg0: i32) -> (i32, i32) {
    %c0_i32 = arith.constant 0 : i32
    %c0_i32_0 = arith.constant 0 : i32
    %c0_i32_1 = arith.constant 0 : i32
    return %c0_i32, %c0_i32_0 : i32, i32
  }
  func.func @transform_4(%arg0: i32) -> (i32, i32) {
    %c0_i32 = arith.constant 0 : i32
    %c0_i32_0 = arith.constant 0 : i32
    %c0_i32_1 = arith.constant 0 : i32
    return %c0_i32, %c0_i32_0 : i32, i32
  }
  func.func @transform_5(%arg0: i32) -> (i32, i32) {
    %c0_i32 = arith.constant 0 : i32
    %c0_i32_0 = arith.constant 0 : i32
    %c0_i32_1 = arith.constant 0 : i32
    return %c0_i32, %c0_i32_0 : i32, i32
  }
  func.func @transform_6(%arg0: i32) -> (i32, i32) {
    %c0_i32 = arith.constant 0 : i32
    %c0_i32_0 = arith.constant 0 : i32
    %c0_i32_1 = arith.constant 0 : i32
    return %c0_i32, %c0_i32_0 : i32, i32
  }
  func.func @transform_7(%arg0: i32) -> (i32, i32) {
    %c0_i32 = arith.constant 0 : i32
    %c0_i32_0 = arith.constant 0 : i32
    return %arg0, %c0_i32 : i32, i32
  }
}

</mosaic_0001>

<llo_original>
// kernel: tpu_custom_call.1
$region0: #{tpu_custom_call.1}
  #allocation0 [shape = 'u32[]', space=smem, size = 0x4, offset = 0x4, fixed_abs, tag = 'smem constant byte address 0x4 - core index']
  #allocation1 [shape = 'u32[144,128]{1,0:T(1,128)}', space=vmem, size = 0x12000, scoped, tag = 'internal scratch']
  #allocation2 [shape = 'f32[1,1]{1,0:T(1,128)S(1)}', space=vmem, size = 0x200, scoped, tag = 'scoped memory for tpu_custom_call.1']
  %s0 = inlined_call_operand.hbm [shape: f32[8,32], index: 0, kind: input, shape index: {}]
  %s1 = inlined_call_operand.hbm [shape: bf16[32,256], index: 1, kind: input, shape index: {}]
  %s2 = inlined_call_operand.vmem [shape: f32[1,256], index: 2, kind: input, shape index: {}]
  %s3 = inlined_call_operand.hbm [shape: bf16[256,256], index: 3, kind: input, shape index: {}]
  %s4 = inlined_call_operand.vmem [shape: f32[1,256], index: 4, kind: input, shape index: {}]
  %s5 = inlined_call_operand.hbm [shape: bf16[256,128], index: 5, kind: input, shape index: {}]
  %s6 = inlined_call_operand.<no memory space> [shape: f32[1,1], index: 6, kind: input, shape index: {}]
  %s7 = inlined_call_operand.vmem [shape: f32[8,1], index: 7, kind: output, shape index: {}]
  %s8 = sld [smem:[#allocation0]]
  $region54: #{tpu_custom_call.1} parent=0
    _
  %s10 = ssub.s32 1, %s8
  %s11 = scalar_select 0, %s10, %s8
  %v12 = vstv %s6
  %13 = vst [vmem:[#allocation2] sm:$0x1] %v12
  $region1: #{tpu_custom_call.1} parent=0
    #allocation3 [shape = 'u8[4096]{0}', space=vmem, size = 0x1000, scoped, tag = 'input window, operand 0, single buffered']
    #allocation4 [shape = 's32[1]{0}', space=sflag, size = 0x4, scoped, tag = 'scoped memory for tpu_custom_call.1']
    #allocation5 [shape = 'u8[16384]{0}', space=vmem, size = 0x4000, scoped, tag = 'input window, operand 1, single buffered']
    #allocation6 [shape = 's32[1]{0}', space=sflag, size = 0x4, scoped, tag = 'scoped memory for tpu_custom_call.1']
    #allocation7 [shape = 'u8[131072]{0}', space=vmem, size = 0x20000, scoped, tag = 'input window, operand 3, single buffered']
    #allocation8 [shape = 'u8[65536]{0}', space=vmem, size = 0x10000, scoped, tag = 'input window, operand 5, single buffered']
    #allocation9 [shape = 's32[1]{0}', space=sflag, size = 0x4, scoped, tag = 'scoped memory for tpu_custom_call.1']
    %14 = vsyncpa [#allocation4], 0
    %15 = vsyncpa [#allocation6], 0
    %16 = vsyncpa [#allocation9], 0
    // Predicated region
    $region2: #{tpu_custom_call.1} parent=1 // pred_check
      _
    $region3: #{tpu_custom_call.1} parent=1 // pred_check_branch
      %18 = sbr.rel (0) target = $region5
    $region4: #{tpu_custom_call.1} parent=1 // pred_region
      %s20 = ssub.s32 128, 128
      %21 = vsyncadd [#allocation4], %s20
      %s23 = sshll.u32 [#allocation3], 4
      %s24 = int_to_ptr.vmem [resolvable:$true] %s23
      %26 = dma.hbm_to_vmem [thread:$0]  %s0, 128, %s24, [#allocation4]
    $region5: #{tpu_custom_call.1} parent=1 // pred_fallthru
      _
    // Predicated region
    $region6: #{tpu_custom_call.1} parent=1 // pred_check
      _
    $region7: #{tpu_custom_call.1} parent=1 // pred_check_branch
      %28 = sbr.rel (0) target = $region9
    $region8: #{tpu_custom_call.1} parent=1 // pred_region
      %s30 = ssub.s32 512, 512
      %31 = vsyncadd [#allocation6], %s30
      %s32 = sshll.u32 [#allocation5], 4
      %s33 = int_to_ptr.vmem [resolvable:$true] %s32
      %38 = dma.hbm_to_vmem [thread:$0]  %s1, 512, %s33, [#allocation6], 128, 128, 8
    $region9: #{tpu_custom_call.1} parent=1 // pred_fallthru
      _
    // Predicated region
    $region10: #{tpu_custom_call.1} parent=1 // pred_check
      _
    $region11: #{tpu_custom_call.1} parent=1 // pred_check_branch
      %40 = sbr.rel (0) target = $region13
    $region12: #{tpu_custom_call.1} parent=1 // pred_region
      _
    $region13: #{tpu_custom_call.1} parent=1 // pred_fallthru
      _
    // Predicated region
    $region14: #{tpu_custom_call.1} parent=1 // pred_check
      _
    $region15: #{tpu_custom_call.1} parent=1 // pred_check_branch
      %42 = sbr.rel (0) target = $region17
    $region16: #{tpu_custom_call.1} parent=1 // pred_region
      %s44 = ssub.s32 4096, 4096
      %45 = vsyncadd [#allocation6], %s44
      %s46 = sshll.u32 [#allocation7], 4
      %s47 = int_to_ptr.vmem [resolvable:$true] %s46
      %52 = dma.hbm_to_vmem [thread:$0]  %s3, 4096, %s47, [#allocation6], 128, 128, 8
    $region17: #{tpu_custom_call.1} parent=1 // pred_fallthru
      _
    // Predicated region
    $region18: #{tpu_custom_call.1} parent=1 // pred_check
      _
    $region19: #{tpu_custom_call.1} parent=1 // pred_check_branch
      %54 = sbr.rel (0) target = $region21
    $region20: #{tpu_custom_call.1} parent=1 // pred_region
      _
    $region21: #{tpu_custom_call.1} parent=1 // pred_fallthru
      _
    // Predicated region
    $region22: #{tpu_custom_call.1} parent=1 // pred_check
      _
    $region23: #{tpu_custom_call.1} parent=1 // pred_check_branch
      %56 = sbr.rel (0) target = $region25
    $region24: #{tpu_custom_call.1} parent=1 // pred_region
      %s58 = ssub.s32 2048, 2048
      %59 = vsyncadd [#allocation9], %s58
      %s60 = sshll.u32 [#allocation8], 4
      %s61 = int_to_ptr.vmem [resolvable:$true] %s60
      %66 = dma.hbm_to_vmem [thread:$0]  %s5, 2048, %s61, [#allocation9], 64, 64, 4
    $region25: #{tpu_custom_call.1} parent=1 // pred_fallthru
      _
    // Predicated region
    $region26: #{tpu_custom_call.1} parent=1 // pred_check
      _
    $region27: #{tpu_custom_call.1} parent=1 // pred_check_branch
      %68 = sbr.rel (0) target = $region29
    $region28: #{tpu_custom_call.1} parent=1 // pred_region
      _
    $region29: #{tpu_custom_call.1} parent=1 // pred_fallthru
      _
    // Predicated region
    $region30: #{tpu_custom_call.1} parent=1 // pred_check
      _
    $region31: #{tpu_custom_call.1} parent=1 // pred_check_branch
      %70 = sbr.rel (0) target = $region33
    $region32: #{tpu_custom_call.1} parent=1 // pred_region
      %71 = dma.done [#allocation4], 128
    $region33: #{tpu_custom_call.1} parent=1 // pred_fallthru
      _
    // Predicated region
    $region34: #{tpu_custom_call.1} parent=1 // pred_check
      _
    $region35: #{tpu_custom_call.1} parent=1 // pred_check_branch
      %73 = sbr.rel (0) target = $region37
    $region36: #{tpu_custom_call.1} parent=1 // pred_region
      %74 = dma.done [#allocation6], 512
    $region37: #{tpu_custom_call.1} parent=1 // pred_fallthru
      _
    // Predicated region
    $region38: #{tpu_custom_call.1} parent=1 // pred_check
      _
    $region39: #{tpu_custom_call.1} parent=1 // pred_check_branch
      %76 = sbr.rel (0) target = $region41
    $region40: #{tpu_custom_call.1} parent=1 // pred_region
      %77 = dma.done [#allocation6], 4096
    $region41: #{tpu_custom_call.1} parent=1 // pred_fallthru
      _
    // Predicated region
    $region42: #{tpu_custom_call.1} parent=1 // pred_check
      _
    $region43: #{tpu_custom_call.1} parent=1 // pred_check_branch
      %79 = sbr.rel (0) target = $region45
    $region44: #{tpu_custom_call.1} parent=1 // pred_region
      %80 = dma.done [#allocation9], 2048
    $region45: #{tpu_custom_call.1} parent=1 // pred_fallthru
      _
    %v82 = vld [vmem:[#allocation3] sm:$0xff]
    %v83 = vpack.c.bf16 %v82, %v82
    %v84 = vld [vmem:[#allocation5] sm:$0xff]
    %v85 = vld [vmem:[#allocation5 + $0x8] sm:$0xff]
    %v86 = vld [vmem:[#allocation5 + $0x10] sm:$0xff]
    %v87 = vld [vmem:[#allocation5 + $0x18] sm:$0xff]
    %v88 = vld [vmem:[%s2] sm:$0x3]
    %v90 = vlaneseq
    %v91 = vshrl.u32 %v90, 7
    %v92 = vsub.s32 0, %v91
    %v93 = vrot.slane %v88, %v92
    %v94 = vlaneseq
    %v95 = vshrl.u32 %v94, 7
    %v96 = vsub.s32 1, %v95
    %v97 = vrot.slane %v88, %v96
    %v104 = vunpack.c.l.b16 %v84
    %v105 = vunpack.c.h.b16 %v84
    %v106 = vunpack.c.l.b16 %v85
    %v107 = vunpack.c.h.b16 %v85
    %v108 = vunpack.c.l.b16 %v86
    %v109 = vunpack.c.h.b16 %v86
    %v110 = vunpack.c.l.b16 %v87
    %v111 = vunpack.c.h.b16 %v87
    %v112 = vpack.c.b16 %v106, %v104
    %v113 = vpack.c.b16 %v107, %v105
    %v114 = vpack.c.b16 %v110, %v108
    %v115 = vpack.c.b16 %v111, %v109
    %vm120 = vcmask 261120
    %v122 = vsel %vm120, %v83, 0
    %124 = vmatprep.subr.bf16.mxu0 %v113
    %125 = vmatpush1.bf16.msra.mxu0 %v112
    %126 = vmatprep.subr.bf16.mxu0 %v115
    %127 = vmatpush1.bf16.msra.mxu0 %v114
    %128 = vmatprep.subr.bf16.mxu0 0
    %129 = vmatpush1.bf16.msra.mxu0 0
    %130 = vmatprep.subr.bf16.mxu0 0
    %131 = vmatpush1.bf16.msra.mxu0 0
    %132 = vmatprep.subr.bf16.mxu0 0
    %133 = vmatpush1.bf16.msra.mxu0 0
    %134 = vmatprep.subr.bf16.mxu0 0
    %135 = vmatpush1.bf16.msra.mxu0 0
    %136 = vmatprep.subr.bf16.mxu0 0
    %137 = vmatpush1.bf16.msra.mxu0 0
    %138 = vmatprep.subr.bf16.mxu0 0
    %139 = vmatpush1.bf16.msra.mxu0 0
    %140 = vmatprep.subr.bf16.mxu0 0
    %141 = vmatpush1.bf16.msra.mxu0 0
    %142 = vmatprep.subr.bf16.mxu0 0
    %143 = vmatpush1.bf16.msra.mxu0 0
    %144 = vmatprep.subr.bf16.mxu0 0
    %145 = vmatpush1.bf16.msra.mxu0 0
    %146 = vmatprep.subr.bf16.mxu0 0
    %147 = vmatpush1.bf16.msra.mxu0 0
    %148 = vmatprep.subr.bf16.mxu0 0
    %149 = vmatpush1.bf16.msra.mxu0 0
    %150 = vmatprep.subr.bf16.mxu0 0
    %151 = vmatpush1.bf16.msra.mxu0 0
    %152 = vmatprep.subr.bf16.mxu0 0
    %153 = vmatpush1.bf16.msra.mxu0 0
    %154 = vmatprep.subr.bf16.mxu0 0
    %155 = vmatpush1.bf16.msra.mxu0 0
    %156 = vmatprep.mubr.bf16.mxu0 0
    %157 = vmatmul.mubr.bf16.gmra.mrb[0].mxu0 %v122
    %v158 = vpop.f32.mrb[0].mxu0
    %v159 = vadd.f32 %v93, %v158
    %v160 = vpop.f32.mrb[0].mxu0
    %v161 = vadd.f32 %v97, %v160
    %v162 = vpop.f32.mrb[0].mxu0
    %v163 = vpop.f32.mrb[0].mxu0
    %164 = vdwg.mxu0
    %vm165 = vcmp.gt.f32.partialorder %v159, 0.0
    %vm166 = vcmp.gt.f32.partialorder %v161, 0.0
    %v167 = vmul.f32 %v159, 0.01
    %v168 = vmul.f32 %v161, 0.01
    %v169 = vsel %vm165, %v159, %v167
    %v170 = vsel %vm166, %v161, %v168
    %v171 = vpack.c.bf16 %v169, %v169
    %v172 = vpack.c.bf16 %v170, %v170
    %v173 = vld [vmem:[#allocation7] sm:$0xff]
    %v174 = vld [vmem:[#allocation7 + $0x8] sm:$0xff]
    %v175 = vld [vmem:[#allocation7 + $0x10] sm:$0xff]
    %v176 = vld [vmem:[#allocation7 + $0x18] sm:$0xff]
    %v177 = vld [vmem:[#allocation7 + $0x20] sm:$0xff]
    %v178 = vld [vmem:[#allocation7 + $0x28] sm:$0xff]
    %v179 = vld [vmem:[#allocation7 + $0x30] sm:$0xff]
    %v180 = vld [vmem:[#allocation7 + $0x38] sm:$0xff]
    %v181 = vld [vmem:[#allocation7 + $0x40] sm:$0xff]
    %v182 = vld [vmem:[#allocation7 + $0x48] sm:$0xff]
    %v183 = vld [vmem:[#allocation7 + $0x50] sm:$0xff]
    %v184 = vld [vmem:[#allocation7 + $0x58] sm:$0xff]
    %v185 = vld [vmem:[#allocation7 + $0x60] sm:$0xff]
    %v186 = vld [vmem:[#allocation7 + $0x68] sm:$0xff]
    %v187 = vld [vmem:[#allocation7 + $0x70] sm:$0xff]
    %v188 = vld [vmem:[#allocation7 + $0x78] sm:$0xff]
    %v189 = vld [vmem:[#allocation7 + $0x80] sm:$0xff]
    %v190 = vld [vmem:[#allocation7 + $0x88] sm:$0xff]
    %v191 = vld [vmem:[#allocation7 + $0x90] sm:$0xff]
    %v192 = vld [vmem:[#allocation7 + $0x98] sm:$0xff]
    %v193 = vld [vmem:[#allocation7 + $0xa0] sm:$0xff]
    %v194 = vld [vmem:[#allocation7 + $0xa8] sm:$0xff]
    %v195 = vld [vmem:[#allocation7 + $0xb0] sm:$0xff]
    %v196 = vld [vmem:[#allocation7 + $0xb8] sm:$0xff]
    %v197 = vld [vmem:[#allocation7 + $0xc0] sm:$0xff]
    %v198 = vld [vmem:[#allocation7 + $0xc8] sm:$0xff]
    %v199 = vld [vmem:[#allocation7 + $0xd0] sm:$0xff]
    %v200 = vld [vmem:[#allocation7 + $0xd8] sm:$0xff]
    %v201 = vld [vmem:[#allocation7 + $0xe0] sm:$0xff]
    %v202 = vld [vmem:[#allocation7 + $0xe8] sm:$0xff]
    %v203 = vld [vmem:[#allocation7 + $0xf0] sm:$0xff]
    %v204 = vld [vmem:[#allocation7 + $0xf8] sm:$0xff]
    %v205 = vld [vmem:[%s4] sm:$0x3]
    %v207 = vlaneseq
    %v208 = vshrl.u32 %v207, 7
    %v209 = vsub.s32 0, %v208
    %v210 = vrot.slane %v205, %v209
    %v211 = vlaneseq
    %v212 = vshrl.u32 %v211, 7
    %v213 = vsub.s32 1, %v212
    %v214 = vrot.slane %v205, %v213
    %v249 = vunpack.c.l.b16 %v173
    %v250 = vunpack.c.h.b16 %v173
    %v251 = vunpack.c.l.b16 %v174
    %v252 = vunpack.c.h.b16 %v174
    %v253 = vunpack.c.l.b16 %v175
    %v254 = vunpack.c.h.b16 %v175
    %v255 = vunpack.c.l.b16 %v176
    %v256 = vunpack.c.h.b16 %v176
    %v257 = vunpack.c.l.b16 %v177
    %v258 = vunpack.c.h.b16 %v177
    %v259 = vunpack.c.l.b16 %v178
    %v260 = vunpack.c.h.b16 %v178
    %v261 = vunpack.c.l.b16 %v179
    %v262 = vunpack.c.h.b16 %v179
    %v263 = vunpack.c.l.b16 %v180
    %v264 = vunpack.c.h.b16 %v180
    %v265 = vunpack.c.l.b16 %v181
    %v266 = vunpack.c.h.b16 %v181
    %v267 = vunpack.c.l.b16 %v182
    %v268 = vunpack.c.h.b16 %v182
    %v269 = vunpack.c.l.b16 %v183
    %v270 = vunpack.c.h.b16 %v183
    %v271 = vunpack.c.l.b16 %v184
    %v272 = vunpack.c.h.b16 %v184
    %v273 = vunpack.c.l.b16 %v185
    %v274 = vunpack.c.h.b16 %v185
    %v275 = vunpack.c.l.b16 %v186
    %v276 = vunpack.c.h.b16 %v186
    %v277 = vunpack.c.l.b16 %v187
    %v278 = vunpack.c.h.b16 %v187
    %v279 = vunpack.c.l.b16 %v188
    %v280 = vunpack.c.h.b16 %v188
    %v281 = vunpack.c.l.b16 %v189
    %v282 = vunpack.c.h.b16 %v189
    %v283 = vunpack.c.l.b16 %v190
    %v284 = vunpack.c.h.b16 %v190
    %v285 = vunpack.c.l.b16 %v191
    %v286 = vunpack.c.h.b16 %v191
    %v287 = vunpack.c.l.b16 %v192
    %v288 = vunpack.c.h.b16 %v192
    %v289 = vunpack.c.l.b16 %v193
    %v290 = vunpack.c.h.b16 %v193
    %v291 = vunpack.c.l.b16 %v194
    %v292 = vunpack.c.h.b16 %v194
    %v293 = vunpack.c.l.b16 %v195
    %v294 = vunpack.c.h.b16 %v195
    %v295 = vunpack.c.l.b16 %v196
    %v296 = vunpack.c.h.b16 %v196
    %v297 = vunpack.c.l.b16 %v197
    %v298 = vunpack.c.h.b16 %v197
    %v299 = vunpack.c.l.b16 %v198
    %v300 = vunpack.c.h.b16 %v198
    %v301 = vunpack.c.l.b16 %v199
    %v302 = vunpack.c.h.b16 %v199
    %v303 = vunpack.c.l.b16 %v200
    %v304 = vunpack.c.h.b16 %v200
    %v305 = vunpack.c.l.b16 %v201
    %v306 = vunpack.c.h.b16 %v201
    %v307 = vunpack.c.l.b16 %v202
    %v308 = vunpack.c.h.b16 %v202
    %v309 = vunpack.c.l.b16 %v203
    %v310 = vunpack.c.h.b16 %v203
    %v311 = vunpack.c.l.b16 %v204
    %v312 = vunpack.c.h.b16 %v204
    %v313 = vpack.c.b16 %v251, %v249
    %v314 = vpack.c.b16 %v252, %v250
    %v315 = vpack.c.b16 %v255, %v253
    %v316 = vpack.c.b16 %v256, %v254
    %v317 = vpack.c.b16 %v259, %v257
    %v318 = vpack.c.b16 %v260, %v258
    %v319 = vpack.c.b16 %v263, %v261
    %v320 = vpack.c.b16 %v264, %v262
    %v321 = vpack.c.b16 %v267, %v265
    %v322 = vpack.c.b16 %v268, %v266
    %v323 = vpack.c.b16 %v271, %v269
    %v324 = vpack.c.b16 %v272, %v270
    %v325 = vpack.c.b16 %v275, %v273
    %v326 = vpack.c.b16 %v276, %v274
    %v327 = vpack.c.b16 %v279, %v277
    %v328 = vpack.c.b16 %v280, %v278
    %v329 = vpack.c.b16 %v283, %v281
    %v330 = vpack.c.b16 %v284, %v282
    %v331 = vpack.c.b16 %v287, %v285
    %v332 = vpack.c.b16 %v288, %v286
    %v333 = vpack.c.b16 %v291, %v289
    %v334 = vpack.c.b16 %v292, %v290
    %v335 = vpack.c.b16 %v295, %v293
    %v336 = vpack.c.b16 %v296, %v294
    %v337 = vpack.c.b16 %v299, %v297
    %v338 = vpack.c.b16 %v300, %v298
    %v339 = vpack.c.b16 %v303, %v301
    %v340 = vpack.c.b16 %v304, %v302
    %v341 = vpack.c.b16 %v307, %v305
    %v342 = vpack.c.b16 %v308, %v306
    %v343 = vpack.c.b16 %v311, %v309
    %v344 = vpack.c.b16 %v312, %v310
    %377 = vmatprep.subr.bf16.mxu0 %v314
    %378 = vmatpush1.bf16.msra.mxu0 %v313
    %379 = vmatprep.subr.bf16.mxu0 %v316
    %380 = vmatpush1.bf16.msra.mxu0 %v315
    %381 = vmatprep.subr.bf16.mxu0 %v318
    %382 = vmatpush1.bf16.msra.mxu0 %v317
    %383 = vmatprep.subr.bf16.mxu0 %v320
    %384 = vmatpush1.bf16.msra.mxu0 %v319
    %385 = vmatprep.subr.bf16.mxu0 %v322
    %386 = vmatpush1.bf16.msra.mxu0 %v321
    %387 = vmatprep.subr.bf16.mxu0 %v324
    %388 = vmatpush1.bf16.msra.mxu0 %v323
    %389 = vmatprep.subr.bf16.mxu0 %v326
    %390 = vmatpush1.bf16.msra.mxu0 %v325
    %391 = vmatprep.subr.bf16.mxu0 %v328
    %392 = vmatpush1.bf16.msra.mxu0 %v327
    %393 = vmatprep.subr.bf16.mxu0 %v330
    %394 = vmatpush1.bf16.msra.mxu0 %v329
    %395 = vmatprep.subr.bf16.mxu0 %v332
    %396 = vmatpush1.bf16.msra.mxu0 %v331
    %397 = vmatprep.subr.bf16.mxu0 %v334
    %398 = vmatpush1.bf16.msra.mxu0 %v333
    %399 = vmatprep.subr.bf16.mxu0 %v336
    %400 = vmatpush1.bf16.msra.mxu0 %v335
    %401 = vmatprep.subr.bf16.mxu0 %v338
    %402 = vmatpush1.bf16.msra.mxu0 %v337
    %403 = vmatprep.subr.bf16.mxu0 %v340
    %404 = vmatpush1.bf16.msra.mxu0 %v339
    %405 = vmatprep.subr.bf16.mxu0 %v342
    %406 = vmatpush1.bf16.msra.mxu0 %v341
    %407 = vmatprep.subr.bf16.mxu0 %v344
    %408 = vmatpush1.bf16.msra.mxu0 %v343
    %409 = vmatprep.mubr.bf16.mxu0 %v172
    %410 = vmatmul.mubr.bf16.gmra.mrb[0].mxu0 %v171
    %v411 = vpop.f32.mrb[0].mxu0
    %v412 = vadd.f32 %v210, %v411
    %v413 = vpop.f32.mrb[0].mxu0
    %v414 = vadd.f32 %v214, %v413
    %v415 = vpop.f32.mrb[0].mxu0
    %v416 = vpop.f32.mrb[0].mxu0
    %417 = vdwg.mxu0
    %vm418 = vcmp.gt.f32.partialorder %v412, 0.0
    %vm419 = vcmp.gt.f32.partialorder %v414, 0.0
    %v420 = vmul.f32 %v412, 0.01
    %v421 = vmul.f32 %v414, 0.01
    %v422 = vsel %vm418, %v412, %v420
    %v423 = vsel %vm419, %v414, %v421
    %v424 = vpack.c.bf16 %v422, %v422
    %v425 = vpack.c.bf16 %v423, %v423
    %v426 = vld [vmem:[#allocation8] sm:$0xf]
    %v427 = vld [vmem:[#allocation8 + $0x4] sm:$0xf]
    %v428 = vld [vmem:[#allocation8 + $0x8] sm:$0xf]
    %v429 = vld [vmem:[#allocation8 + $0xc] sm:$0xf]
    %v430 = vld [vmem:[#allocation8 + $0x10] sm:$0xf]
    %v431 = vld [vmem:[#allocation8 + $0x14] sm:$0xf]
    %v432 = vld [vmem:[#allocation8 + $0x18] sm:$0xf]
    %v433 = vld [vmem:[#allocation8 + $0x1c] sm:$0xf]
    %v434 = vld [vmem:[#allocation8 + $0x20] sm:$0xf]
    %v435 = vld [vmem:[#allocation8 + $0x24] sm:$0xf]
    %v436 = vld [vmem:[#allocation8 + $0x28] sm:$0xf]
    %v437 = vld [vmem:[#allocation8 + $0x2c] sm:$0xf]
    %v438 = vld [vmem:[#allocation8 + $0x30] sm:$0xf]
    %v439 = vld [vmem:[#allocation8 + $0x34] sm:$0xf]
    %v440 = vld [vmem:[#allocation8 + $0x38] sm:$0xf]
    %v441 = vld [vmem:[#allocation8 + $0x3c] sm:$0xf]
    %v442 = vld [vmem:[#allocation8 + $0x40] sm:$0xf]
    %v443 = vld [vmem:[#allocation8 + $0x44] sm:$0xf]
    %v444 = vld [vmem:[#allocation8 + $0x48] sm:$0xf]
    %v445 = vld [vmem:[#allocation8 + $0x4c] sm:$0xf]
    %v446 = vld [vmem:[#allocation8 + $0x50] sm:$0xf]
    %v447 = vld [vmem:[#allocation8 + $0x54] sm:$0xf]
    %v448 = vld [vmem:[#allocation8 + $0x58] sm:$0xf]
    %v449 = vld [vmem:[#allocation8 + $0x5c] sm:$0xf]
    %v450 = vld [vmem:[#allocation8 + $0x60] sm:$0xf]
    %v451 = vld [vmem:[#allocation8 + $0x64] sm:$0xf]
    %v452 = vld [vmem:[#allocation8 + $0x68] sm:$0xf]
    %v453 = vld [vmem:[#allocation8 + $0x6c] sm:$0xf]
    %v454 = vld [vmem:[#allocation8 + $0x70] sm:$0xf]
    %v455 = vld [vmem:[#allocation8 + $0x74] sm:$0xf]
    %v456 = vld [vmem:[#allocation8 + $0x78] sm:$0xf]
    %v457 = vld [vmem:[#allocation8 + $0x7c] sm:$0xf]
    %v490 = vunpack.c.l.b16 %v426
    %v491 = vunpack.c.l.b16 %v427
    %v492 = vunpack.c.l.b16 %v428
    %v493 = vunpack.c.l.b16 %v429
    %v494 = vunpack.c.l.b16 %v430
    %v495 = vunpack.c.l.b16 %v431
    %v496 = vunpack.c.l.b16 %v432
    %v497 = vunpack.c.l.b16 %v433
    %v498 = vunpack.c.l.b16 %v434
    %v499 = vunpack.c.l.b16 %v435
    %v500 = vunpack.c.l.b16 %v436
    %v501 = vunpack.c.l.b16 %v437
    %v502 = vunpack.c.l.b16 %v438
    %v503 = vunpack.c.l.b16 %v439
    %v504 = vunpack.c.l.b16 %v440
    %v505 = vunpack.c.l.b16 %v441
    %v506 = vunpack.c.l.b16 %v442
    %v507 = vunpack.c.l.b16 %v443
    %v508 = vunpack.c.l.b16 %v444
    %v509 = vunpack.c.l.b16 %v445
    %v510 = vunpack.c.l.b16 %v446
    %v511 = vunpack.c.l.b16 %v447
    %v512 = vunpack.c.l.b16 %v448
    %v513 = vunpack.c.l.b16 %v449
    %v514 = vunpack.c.l.b16 %v450
    %v515 = vunpack.c.l.b16 %v451
    %v516 = vunpack.c.l.b16 %v452
    %v517 = vunpack.c.l.b16 %v453
    %v518 = vunpack.c.l.b16 %v454
    %v519 = vunpack.c.l.b16 %v455
    %v520 = vunpack.c.l.b16 %v456
    %v521 = vunpack.c.l.b16 %v457
    %v522 = vpack.c.b16 %v491, %v490
    %v523 = vpack.c.b16 %v493, %v492
    %v524 = vpack.c.b16 %v495, %v494
    %v525 = vpack.c.b16 %v497, %v496
    %v526 = vpack.c.b16 %v499, %v498
    %v527 = vpack.c.b16 %v501, %v500
    %v528 = vpack.c.b16 %v503, %v502
    %v529 = vpack.c.b16 %v505, %v504
    %v530 = vpack.c.b16 %v507, %v506
    %v531 = vpack.c.b16 %v509, %v508
    %v532 = vpack.c.b16 %v511, %v510
    %v533 = vpack.c.b16 %v513, %v512
    %v534 = vpack.c.b16 %v515, %v514
    %v535 = vpack.c.b16 %v517, %v516
    %v536 = vpack.c.b16 %v519, %v518
    %v537 = vpack.c.b16 %v521, %v520
    %554 = vmatprep.subr.bf16.mxu0 0
    %555 = vmatpush1.bf16.msra.mxu0 %v522
    %556 = vmatprep.subr.bf16.mxu0 0
    %557 = vmatpush1.bf16.msra.mxu0 %v523
    %558 = vmatprep.subr.bf16.mxu0 0
    %559 = vmatpush1.bf16.msra.mxu0 %v524
    %560 = vmatprep.subr.bf16.mxu0 0
    %561 = vmatpush1.bf16.msra.mxu0 %v525
    %562 = vmatprep.subr.bf16.mxu0 0
    %563 = vmatpush1.bf16.msra.mxu0 %v526
    %564 = vmatprep.subr.bf16.mxu0 0
    %565 = vmatpush1.bf16.msra.mxu0 %v527
    %566 = vmatprep.subr.bf16.mxu0 0
    %567 = vmatpush1.bf16.msra.mxu0 %v528
    %568 = vmatprep.subr.bf16.mxu0 0
    %569 = vmatpush1.bf16.msra.mxu0 %v529
    %570 = vmatprep.subr.bf16.mxu0 0
    %571 = vmatpush1.bf16.msra.mxu0 %v530
    %572 = vmatprep.subr.bf16.mxu0 0
    %573 = vmatpush1.bf16.msra.mxu0 %v531
    %574 = vmatprep.subr.bf16.mxu0 0
    %575 = vmatpush1.bf16.msra.mxu0 %v532
    %576 = vmatprep.subr.bf16.mxu0 0
    %577 = vmatpush1.bf16.msra.mxu0 %v533
    %578 = vmatprep.subr.bf16.mxu0 0
    %579 = vmatpush1.bf16.msra.mxu0 %v534
    %580 = vmatprep.subr.bf16.mxu0 0
    %581 = vmatpush1.bf16.msra.mxu0 %v535
    %582 = vmatprep.subr.bf16.mxu0 0
    %583 = vmatpush1.bf16.msra.mxu0 %v536
    %584 = vmatprep.subr.bf16.mxu0 0
    %585 = vmatpush1.bf16.msra.mxu0 %v537
    %586 = vmatprep.mubr.bf16.mxu0 %v425
    %587 = vmatmul.mubr.bf16.gmra.mrb[0].mxu0 %v424
    %v588 = vpop.f32.mrb[0].mxu0
    %v589 = vadd.f32 0.0, %v588
    %v590 = vpop.f32.mrb[0].mxu0
    %v591 = vpop.f32.mrb[0].mxu0
    %v592 = vpop.f32.mrb[0].mxu0
    %593 = vdwg.mxu0
    %v594 = vld [vmem:[#allocation2] sm:$0x1]
    %v596 = vlaneseq
    %v597 = vshrl.u32 %v596, 7
    %v598 = vsub.s32 0, %v597
    %v599 = vrot.slane %v594, %v598
    %v601 = vadd.f32 %v589, %v599
    %v602 = vmax.f32 %v601, -30.0
    %v603 = vmin.f32 %v602, 30.0
    %v604 = vsub.f32 0.0, %v603
    %v605 = vmul.f32 %v604, 1.442695
    %v606 = vpow.pop %v605
    %v607 = vadd.f32 %v606, 1.0
    %v608 = vrcp.pop %v607
    %v609 = vmul.f32 1.0, %v608
    %vm610 = vcmask 7168
    %611 = vst.msk [vmem:[%s7] sm:$0xff] %vm610, %v609
    // Predicated region
    $region46: #{tpu_custom_call.1} parent=1 // pred_check
      _
    $region47: #{tpu_custom_call.1} parent=1 // pred_check_branch
      %613 = sbr.rel (0) target = $region49
    $region48: #{tpu_custom_call.1} parent=1 // pred_region
      _
    $region49: #{tpu_custom_call.1} parent=1 // pred_fallthru
      _
    // Predicated region
    $region50: #{tpu_custom_call.1} parent=1 // pred_check
      _
    $region51: #{tpu_custom_call.1} parent=1 // pred_check_branch
      %615 = sbr.rel (0) target = $region53
    $region52: #{tpu_custom_call.1} parent=1 // pred_region
      _
    $region53: #{tpu_custom_call.1} parent=1 // pred_fallthru
      _
    %616 = vsyncpa [#allocation4], 1
    %617 = vsyncpa [#allocation6], 1
    %618 = vsyncpa [#allocation9], 1

</llo_original>
